<compile_context>
chip_gen: v7x
topology: tpu7x:2x2x1
jax: 0.10.0
libtpu: 0.0.40
codegen_flags: <defaults>
</compile_context>

<pallas_src>
import jax
import jax.numpy as jnp
from jax.experimental import pallas as pl
from jax.experimental.pallas import tpu as pltpu


def _concat_conv1x1_kernel(x_ref, y_ref, wx_ref, wy_ref, b_ref, o_ref):
    # x_ref: (Cx, TS)   channels on sublanes, spatial on lanes
    # y_ref: (Cy, TS)
    # wx_ref: (Cout, Cx), wy_ref: (Cout, Cy), b_ref: (Cout, 1)
    # o_ref: (Cout, TS)  lane-dense output tile
    acc = jnp.dot(wx_ref[...], x_ref[...], preferred_element_type=jnp.float32)
    acc = acc + jnp.dot(wy_ref[...], y_ref[...], preferred_element_type=jnp.float32)
    o_ref[...] = (acc + b_ref[...]).astype(o_ref.dtype)


def _choose_tile(S, N, Cx, Cy, Cout, dtype_bytes, *,
                 vmem_budget_bytes, target_step_bytes, min_total_steps):
    """Pick a 128-multiple spatial tile ts and grid_s = cdiv(S, ts)."""
    # Sublane tile for this dtype (8 for f32, 16 for bf16, 32 for int8).
    sub = 8 * max(1, 4 // dtype_bytes)
    pad = lambda c: ((c + sub - 1) // sub) * sub

    s_units = -(-S // 128)                                # ceil(S / 128)
    # HBM traffic per 128 lanes of tile (x + y read, out write), unpadded.
    hbm_per_unit = (Cx + Cy + Cout) * 128 * dtype_bytes
    # Double-buffered VMEM footprint per 128 lanes (padded channel dims).
    vmem_per_unit = 2 * (pad(Cx) + pad(Cy) + pad(Cout)) * 128 * dtype_bytes

    units = min(
        s_units,
        max(1, vmem_budget_bytes // vmem_per_unit),       # VMEM cap (v7x-safe)
        max(1, -(-target_step_bytes // hbm_per_unit)),    # ~target MiB / step
    )
    grid_s = -(-s_units // units)

    # Guarantee enough total grid steps for DMA/compute overlap.
    if N * grid_s < min_total_steps and s_units > grid_s:
        need = min(s_units, -(-min_total_steps // N))
        units = max(1, s_units // need)
        grid_s = -(-s_units // units)

    # v7x: prefer an even total step count so both TensorCores stay busy.
    if (N * grid_s) % 2 == 1 and s_units >= 2:
        for cand in range(grid_s + 1, min(s_units, grid_s + 4) + 1):
            u = max(1, s_units // cand)
            g = -(-s_units // u)
            if (N * g) % 2 == 0:
                units, grid_s = u, g
                break

    ts = units * 128
    vmem_bytes = vmem_per_unit * units
    return ts, grid_s, vmem_bytes


def concat_conv3d(x, y, weight, bias, *,
                  target_step_bytes=4 * 1024 * 1024,
                  vmem_budget_bytes=40 * 1024 * 1024,
                  min_total_steps=8):
    """ConcatConv3D forward.

    x: (N, Cx, D, H, W), y: (N, Cy, D, H, W)
    weight: (Cout, Cx + Cy)  -- squeezed 1x1x1 Conv3d weight
    bias:   (Cout,)
    returns (N, Cout, D, H, W)
    """
    N, Cx, D, H, W = x.shape
    Cy = y.shape[1]
    Cout, Cin = weight.shape
    assert Cin == Cx + Cy, "in_channels must equal x.channels + y.channels"

    S = D * H * W
    # Pure reshapes -- NCDHW stays in place, no transposes.
    x_mat = x.reshape(N, Cx, S)
    y_mat = y.reshape(N, Cy, S)

    # Split conv weight by source tensor (fuses the concat into the matmul).
    wx = weight[:, :Cx]          # (Cout, Cx)
    wy = weight[:, Cx:]          # (Cout, Cy)
    b2 = bias.reshape(Cout, 1)   # broadcasts over lanes inside the kernel

    dtype_bytes = jnp.dtype(x.dtype).itemsize
    ts, grid_s, tile_vmem = _choose_tile(
        S, N, Cx, Cy, Cout, dtype_bytes,
        vmem_budget_bytes=vmem_budget_bytes,
        target_step_bytes=target_step_bytes,
        min_total_steps=min_total_steps,
    )
    grid = (N, grid_s)

    # Scoped VMEM limit: actual double-buffered tile footprint + resident
    # weights/bias + headroom, clamped to stay well under v7x's 64 MiB.
    weights_bytes = (Cout * (Cx + Cy) + Cout * 128) * 4
    vmem_limit = tile_vmem + 4 * weights_bytes + (4 << 20)
    vmem_limit = int(min(max(vmem_limit, 16 << 20), 56 << 20))

    # NOTE: if profiles still show exposed DMA after the bigger tiles, the x/y
    # in_specs can take pipeline_mode=pl.Buffered(3) (per-buffer cost is tiny
    # at these channel counts).
    # TODO(synk): when S is small and N is large, block several batch elements
    # per grid step (3-D block) to keep per-step bytes up; not needed here.
    out_mat = pl.pallas_call(
        _concat_conv1x1_kernel,
        out_shape=jax.ShapeDtypeStruct((N, Cout, S), x.dtype),
        grid_spec=pltpu.PrefetchScalarGridSpec(
            num_scalar_prefetch=0,
            grid=grid,
            in_specs=[
                pl.BlockSpec((None, Cx, ts), lambda n, s: (n, 0, s)),
                pl.BlockSpec((None, Cy, ts), lambda n, s: (n, 0, s)),
                pl.BlockSpec((Cout, Cx), lambda n, s: (0, 0)),  # resident weights
                pl.BlockSpec((Cout, Cy), lambda n, s: (0, 0)),
                pl.BlockSpec((Cout, 1), lambda n, s: (0, 0)),
            ],
            out_specs=pl.BlockSpec((None, Cout, ts), lambda n, s: (n, 0, s)),
        ),
        compiler_params=pltpu.CompilerParams(
            dimension_semantics=("parallel", "parallel"),
            vmem_limit_bytes=vmem_limit,
        ),
    )(x_mat, y_mat, wx, wy, b2)

    # (N, Cout, S) -> (N, Cout, D, H, W): pure reshape, no transpose.
    return out_mat.reshape(N, Cout, D, H, W)


if __name__ == "__main__":
    # Small deterministic problem: x has 4 channels, y has 4 channels,
    # in_channels = 8 (after concat), out_channels = 8, spatial 16^3, batch 2.
    N, Cx, Cy, D, H, W = 2, 4, 4, 16, 16, 16
    Cin, Cout = Cx + Cy, 8

    key = jax.random.PRNGKey(0)
    kx, ky, kw, kb = jax.random.split(key, 4)

    x = jax.random.normal(kx, (N, Cx, D, H, W), dtype=jnp.float32)
    y = jax.random.normal(ky, (N, Cy, D, H, W), dtype=jnp.float32)

    # Deterministic Conv3d(kernel_size=1) parameter init (uniform with bound
    # 1/sqrt(fan_in), matching PyTorch's default shapes/scale).
    bound = 1.0 / (Cin ** 0.5)
    weight = jax.random.uniform(kw, (Cout, Cin), jnp.float32, -bound, bound)
    bias = jax.random.uniform(kb, (Cout,), jnp.float32, -bound, bound)

    out = concat_conv3d(x, y, weight, bias)
    out = jax.block_until_ready(out)

    # Pure-JAX reference: concat along channel dim + pointwise conv (einsum).
    xcat = jnp.concatenate([x, y], axis=1)
    ref = jnp.einsum("ncdhw,oc->nodhw", xcat, weight) + bias[None, :, None, None, None]

    assert out.shape == (N, Cout, D, H, W)
    assert jnp.allclose(out, ref, atol=1e-5, rtol=1e-5)
    print("KERNEL_OK")
</pallas_src>

<mosaic_0001>
module attributes {stable_mosaic.version = 11 : i64} {
  func.func @_concat_conv1x1_kernel(%arg0: i32, %arg1: i32, %arg2: memref<1x4x1024xf32, #tpu.memory_space<vmem>>, %arg3: memref<1x4x1024xf32, #tpu.memory_space<vmem>>, %arg4: memref<8x4xf32, #tpu.memory_space<vmem>>, %arg5: memref<8x4xf32, #tpu.memory_space<vmem>>, %arg6: memref<8x1xf32, #tpu.memory_space<vmem>>, %arg7: memref<1x8x1024xf32, #tpu.memory_space<vmem>>) attributes {dimension_semantics = [#tpu.dimension_semantics<parallel>, #tpu.dimension_semantics<parallel>], iteration_bounds = array<i64: 2, 4>, scalar_prefetch = 0 : i64, scratch_operands = 0 : i64, tpu.core_type = #tpu.core_type<tc>, window_params = [{transform_indices = @transform_0, window_bounds = array<i64: 1, 4, 1024>}, {transform_indices = @transform_1, window_bounds = array<i64: 1, 4, 1024>}, {pipeline_mode = #tpu.pipeline_mode<synchronous>, transform_indices = @transform_2, window_bounds = array<i64: 8, 4>}, {pipeline_mode = #tpu.pipeline_mode<synchronous>, transform_indices = @transform_3, window_bounds = array<i64: 8, 4>}, {pipeline_mode = #tpu.pipeline_mode<synchronous>, transform_indices = @transform_4, window_bounds = array<i64: 8, 1>}, {transform_indices = @transform_5, window_bounds = array<i64: 1, 8, 1024>}]} {
    %c0 = arith.constant 0 : index
    %c0_0 = arith.constant 0 : index
    %0 = vector.load %arg4[%c0, %c0_0] : memref<8x4xf32, #tpu.memory_space<vmem>>, vector<8x4xf32>
    %c0_1 = arith.constant 0 : index
    %c0_2 = arith.constant 0 : index
    %c0_3 = arith.constant 0 : index
    %1 = vector.load %arg2[%c0_1, %c0_2, %c0_3] : memref<1x4x1024xf32, #tpu.memory_space<vmem>>, vector<1x4x1024xf32>
    %2 = vector.shape_cast %1 : vector<1x4x1024xf32> to vector<4x1024xf32>
    %cst = arith.constant dense<0.000000e+00> : vector<8x1024xf32>
    %3 = tpu.matmul %0, %2, %cst {dimension_numbers = #tpu.dot_dimension_numbers<[1], [0], [0], [1], [0, 0, 1, 1], [], []>} : vector<8x4xf32>, vector<4x1024xf32>, vector<8x1024xf32> -> vector<8x1024xf32>
    %c0_4 = arith.constant 0 : index
    %c0_5 = arith.constant 0 : index
    %4 = vector.load %arg5[%c0_4, %c0_5] : memref<8x4xf32, #tpu.memory_space<vmem>>, vector<8x4xf32>
    %c0_6 = arith.constant 0 : index
    %c0_7 = arith.constant 0 : index
    %c0_8 = arith.constant 0 : index
    %5 = vector.load %arg3[%c0_6, %c0_7, %c0_8] : memref<1x4x1024xf32, #tpu.memory_space<vmem>>, vector<1x4x1024xf32>
    %6 = vector.shape_cast %5 : vector<1x4x1024xf32> to vector<4x1024xf32>
    %cst_9 = arith.constant dense<0.000000e+00> : vector<8x1024xf32>
    %7 = tpu.matmul %4, %6, %cst_9 {dimension_numbers = #tpu.dot_dimension_numbers<[1], [0], [0], [1], [0, 0, 1, 1], [], []>} : vector<8x4xf32>, vector<4x1024xf32>, vector<8x1024xf32> -> vector<8x1024xf32>
    %8 = arith.addf %3, %7 : vector<8x1024xf32>
    %c0_10 = arith.constant 0 : index
    %c0_11 = arith.constant 0 : index
    %9 = vector.load %arg6[%c0_10, %c0_11] : memref<8x1xf32, #tpu.memory_space<vmem>>, vector<8x1xf32>
    %10 = vector.broadcast %9 : vector<8x1xf32> to vector<8x1024xf32>
    %11 = arith.addf %8, %10 : vector<8x1024xf32>
    %c0_12 = arith.constant 0 : index
    %c0_13 = arith.constant 0 : index
    %c0_14 = arith.constant 0 : index
    %12 = vector.load %arg7[%c0_12, %c0_13, %c0_14] : memref<1x8x1024xf32, #tpu.memory_space<vmem>>, vector<1x8x1024xf32>
    %13 = vector.shape_cast %12 : vector<1x8x1024xf32> to vector<8x1024xf32>
    %14 = vector.shape_cast %11 : vector<8x1024xf32> to vector<1x8x1024xf32>
    tpu.vector_store %arg7[%c0_12, %c0_13, %c0_14], %14 {strides = array<i32>} : memref<1x8x1024xf32, #tpu.memory_space<vmem>>, vector<1x8x1024xf32>,
    return
  }
  func.func @transform_0(%arg0: i32, %arg1: i32) -> (i32, i32, i32) {
    %c0_i32 = arith.constant 0 : i32
    %c0_i32_0 = arith.constant 0 : i32
    return %arg0, %c0_i32, %arg1 : i32, i32, i32
  }
  func.func @transform_1(%arg0: i32, %arg1: i32) -> (i32, i32, i32) {
    %c0_i32 = arith.constant 0 : i32
    %c0_i32_0 = arith.constant 0 : i32
    return %arg0, %c0_i32, %arg1 : i32, i32, i32
  }
  func.func @transform_2(%arg0: i32, %arg1: i32) -> (i32, i32) {
    %c0_i32 = arith.constant 0 : i32
    %c0_i32_0 = arith.constant 0 : i32
    %c0_i32_1 = arith.constant 0 : i32
    return %c0_i32, %c0_i32_0 : i32, i32
  }
  func.func @transform_3(%arg0: i32, %arg1: i32) -> (i32, i32) {
    %c0_i32 = arith.constant 0 : i32
    %c0_i32_0 = arith.constant 0 : i32
    %c0_i32_1 = arith.constant 0 : i32
    return %c0_i32, %c0_i32_0 : i32, i32
  }
  func.func @transform_4(%arg0: i32, %arg1: i32) -> (i32, i32) {
    %c0_i32 = arith.constant 0 : i32
    %c0_i32_0 = arith.constant 0 : i32
    %c0_i32_1 = arith.constant 0 : i32
    return %c0_i32, %c0_i32_0 : i32, i32
  }
  func.func @transform_5(%arg0: i32, %arg1: i32) -> (i32, i32, i32) {
    %c0_i32 = arith.constant 0 : i32
    %c0_i32_0 = arith.constant 0 : i32
    return %arg0, %c0_i32, %arg1 : i32, i32, i32
  }
}

</mosaic_0001>

<llo_original>
// kernel: tpu_custom_call.1
$region0: #{tpu_custom_call.1}
  #allocation0 [shape = 'u32[]', space=smem, size = 0x4, offset = 0x4, fixed_abs, tag = 'smem constant byte address 0x4 - core index']
  #allocation1 [shape = 'u32[144,128]{1,0:T(1,128)}', space=vmem, size = 0x12000, scoped, tag = 'internal scratch']
  %s0 = inlined_call_operand.hbm [shape: f32[2,4,4096], index: 0, kind: input, shape index: {}]
  %s1 = inlined_call_operand.hbm [shape: f32[2,4,4096], index: 1, kind: input, shape index: {}]
  %s2 = inlined_call_operand.vmem [shape: f32[8,4], index: 2, kind: input, shape index: {}]
  %s3 = inlined_call_operand.vmem [shape: f32[8,4], index: 3, kind: input, shape index: {}]
  %s4 = inlined_call_operand.vmem [shape: f32[8,1], index: 4, kind: input, shape index: {}]
  %s5 = inlined_call_operand.hbm [shape: f32[2,8,4096], index: 5, kind: output, shape index: {}]
  %s6 = sld [smem:[#allocation0]]
  $region61: #{tpu_custom_call.1} parent=0
    _
  %s8 = ssub.s32 1, %s6
  %s9 = scalar_select 0, %s8, %s6
  $region1: #{tpu_custom_call.1} parent=0
    #allocation2 [shape = 'u8[32768]{0}', space=vmem, size = 0x8000, scoped, tag = 'input window, operand 0']
    #allocation3 [shape = 's32[2]{0}', space=sflag, size = 0x8, scoped, tag = 'scoped memory for tpu_custom_call.1']
    #allocation4 [shape = 's32[2]{0}', space=sflag, size = 0x8, scoped, tag = 'scoped memory for tpu_custom_call.1']
    #allocation5 [shape = 'u8[32768]{0}', space=vmem, size = 0x8000, scoped, tag = 'input window, operand 1']
    #allocation6 [shape = 's32[2]{0}', space=sflag, size = 0x8, scoped, tag = 'scoped memory for tpu_custom_call.1']
    #allocation7 [shape = 'u8[65536]{0}', space=vmem, size = 0x10000, scoped, tag = 'output window, operand 0']
    %10 = vsyncpa [#allocation3], 0
    %s11 = scalar_lea.sflag [#allocation3], 1
    %12 = vsyncpa %s11, 0
    %13 = vsyncpa [#allocation6], 0
    %s14 = scalar_lea.sflag [#allocation6], 1
    %15 = vsyncpa %s14, 0
    %16 = vsyncpa [#allocation4], 0
    %s17 = scalar_lea.sflag [#allocation4], 1
    %18 = vsyncpa %s17, 0
    loop: start=0, step=1, limit=10
    $region2: #{tpu_custom_call.1} parent=1 // loop_pre_header
      _
    $region3: #{tpu_custom_call.1} parent=1 // loop_header
      %s20 = sphi 0, %s24
      %p21 = scmp.ge.s32.totalorder %s20, 10
      %s27 = sphi 0, %s39
      %s28 = sphi 0, %s35
      %s29 = sphi 0, %s27
      %s30 = sphi 0, %s28
      %s31 = sphi 0, %s29
      %s32 = sphi 0, %s30
      %s44 = sphi 0, %s46
      %s47 = sphi 0, %s44
      %s48 = sphi 0, %s47
      %s64 = sphi 0, %s48
      %s72 = sphi 0, %s74
      %s75 = sphi 0, %s72
      %s76 = sphi 0, %s75
      %s92 = sphi 0, %s76
      %s96 = sphi 0, %s96
      %s98 = sphi 0, %s96
      %s99 = sphi 0, %s98
      %s113 = sphi 0, %s99
      %s117 = sphi 0, %s117
      %s119 = sphi 0, %s117
      %s120 = sphi 0, %s119
      %s134 = sphi 0, %s120
      %s138 = sphi 0, %s138
      %s140 = sphi 0, %s138
      %s141 = sphi 0, %s140
      %s155 = sphi 0, %s141
      %s163 = sphi 0, %s165
      %s166 = sphi 0, %s163
      %s167 = sphi 0, %s166
      %s183 = sphi 0, %s167
    $region4: #{tpu_custom_call.1} parent=1 // loop_header_branch
      %23 = sbr.rel (%p21) target = $region8
    $region5: #{tpu_custom_call.1} parent=1 // loop_body
      %s25 = ssub.s32 %s20, 1
      %s26 = ssub.s32 %s20, 2
      %s33 = sadd.s32 1, %s28
      %p34 = scmp.ge.s32.totalorder %s33, 4
      %s35 = scalar_select %p34, 0, %s33
      %s36 = sadd.s32 1, %s27
      %s37 = scalar_select %p34, %s36, %s27
      %p38 = scmp.ge.s32.totalorder %s37, 2
      %s39 = scalar_select %p38, 0, %s37
      %s40 = ssub.s32 %s27, %s39
      %s41 = ssub.s32 %s28, %s35
      %s42 = sor.u32 %s40, %s41
      %p43 = scmp.eq.s32.totalorder %s42, 0
      %s45 = sadd.s32 %s44, 1
      %s46 = scalar_select %p43, %s44, %s45
      %p49 = pneg %p43
      %p50 = scmp.eq.s32.totalorder %s20, 7
      %p51 = por %p49, %p50
      %p52 = scmp.ne.s32.totalorder %s44, %s47
      %p53 = scmp.eq.s32.totalorder %s20, 0
      %p54 = por %p52, %p53
      %p55 = scmp.ne.s32.totalorder %s44, %s47
      %p56 = scmp.eq.s32.totalorder %s25, 7
      %p57 = por %p55, %p56
      %p58 = scmp.ne.s32.totalorder %s47, %s48
      %p59 = scmp.eq.s32.totalorder %s25, 0
      %p60 = por %p58, %p59
      %p61 = scmp.ne.s32.totalorder %s47, %s48
      %p62 = scmp.eq.s32.totalorder %s26, 7
      %p63 = por %p61, %p62
      %p65 = scmp.ne.s32.totalorder %s48, %s64
      %p66 = scmp.eq.s32.totalorder %s26, 0
      %p67 = por %p65, %p66
      %s68 = ssub.s32 %s27, %s39
      %s69 = ssub.s32 %s28, %s35
      %s70 = sor.u32 %s68, %s69
      %p71 = scmp.eq.s32.totalorder %s70, 0
      %s73 = sadd.s32 %s72, 1
      %s74 = scalar_select %p71, %s72, %s73
      %p77 = pneg %p71
      %p78 = scmp.eq.s32.totalorder %s20, 7
      %p79 = por %p77, %p78
      %p80 = scmp.ne.s32.totalorder %s72, %s75
      %p81 = scmp.eq.s32.totalorder %s20, 0
      %p82 = por %p80, %p81
      %p83 = scmp.ne.s32.totalorder %s72, %s75
      %p84 = scmp.eq.s32.totalorder %s25, 7
      %p85 = por %p83, %p84
      %p86 = scmp.ne.s32.totalorder %s75, %s76
      %p87 = scmp.eq.s32.totalorder %s25, 0
      %p88 = por %p86, %p87
      %p89 = scmp.ne.s32.totalorder %s75, %s76
      %p90 = scmp.eq.s32.totalorder %s26, 7
      %p91 = por %p89, %p90
      %p93 = scmp.ne.s32.totalorder %s76, %s92
      %p94 = scmp.eq.s32.totalorder %s26, 0
      %p95 = por %p93, %p94
      %s97 = sadd.s32 %s96, 1
      %p100 = scmp.eq.s32.totalorder %s20, 7
      %p101 = scmp.ne.s32.totalorder %s96, %s98
      %p102 = scmp.eq.s32.totalorder %s20, 0
      %p103 = por %p101, %p102
      %p104 = scmp.ne.s32.totalorder %s96, %s98
      %p105 = scmp.eq.s32.totalorder %s25, 7
      %p106 = por %p104, %p105
      %p107 = scmp.ne.s32.totalorder %s98, %s99
      %p108 = scmp.eq.s32.totalorder %s25, 0
      %p109 = por %p107, %p108
      %p110 = scmp.ne.s32.totalorder %s98, %s99
      %p111 = scmp.eq.s32.totalorder %s26, 7
      %p112 = por %p110, %p111
      %p114 = scmp.ne.s32.totalorder %s99, %s113
      %p115 = scmp.eq.s32.totalorder %s26, 0
      %p116 = por %p114, %p115
      %s118 = sadd.s32 %s117, 1
      %p121 = scmp.eq.s32.totalorder %s20, 7
      %p122 = scmp.ne.s32.totalorder %s117, %s119
      %p123 = scmp.eq.s32.totalorder %s20, 0
      %p124 = por %p122, %p123
      %p125 = scmp.ne.s32.totalorder %s117, %s119
      %p126 = scmp.eq.s32.totalorder %s25, 7
      %p127 = por %p125, %p126
      %p128 = scmp.ne.s32.totalorder %s119, %s120
      %p129 = scmp.eq.s32.totalorder %s25, 0
      %p130 = por %p128, %p129
      %p131 = scmp.ne.s32.totalorder %s119, %s120
      %p132 = scmp.eq.s32.totalorder %s26, 7
      %p133 = por %p131, %p132
      %p135 = scmp.ne.s32.totalorder %s120, %s134
      %p136 = scmp.eq.s32.totalorder %s26, 0
      %p137 = por %p135, %p136
      %s139 = sadd.s32 %s138, 1
      %p142 = scmp.eq.s32.totalorder %s20, 7
      %p143 = scmp.ne.s32.totalorder %s138, %s140
      %p144 = scmp.eq.s32.totalorder %s20, 0
      %p145 = por %p143, %p144
      %p146 = scmp.ne.s32.totalorder %s138, %s140
      %p147 = scmp.eq.s32.totalorder %s25, 7
      %p148 = por %p146, %p147
      %p149 = scmp.ne.s32.totalorder %s140, %s141
      %p150 = scmp.eq.s32.totalorder %s25, 0
      %p151 = por %p149, %p150
      %p152 = scmp.ne.s32.totalorder %s140, %s141
      %p153 = scmp.eq.s32.totalorder %s26, 7
      %p154 = por %p152, %p153
      %p156 = scmp.ne.s32.totalorder %s141, %s155
      %p157 = scmp.eq.s32.totalorder %s26, 0
      %p158 = por %p156, %p157
      %s159 = ssub.s32 %s27, %s39
      %s160 = ssub.s32 %s28, %s35
      %s161 = sor.u32 %s159, %s160
      %p162 = scmp.eq.s32.totalorder %s161, 0
      %s164 = sadd.s32 %s163, 1
      %s165 = scalar_select %p162, %s163, %s164
      %p168 = pneg %p162
      %p169 = scmp.eq.s32.totalorder %s20, 7
      %p170 = por %p168, %p169
      %p171 = scmp.ne.s32.totalorder %s163, %s166
      %p172 = scmp.eq.s32.totalorder %s20, 0
      %p173 = por %p171, %p172
      %p174 = scmp.ne.s32.totalorder %s163, %s166
      %p175 = scmp.eq.s32.totalorder %s25, 7
      %p176 = por %p174, %p175
      %p177 = scmp.ne.s32.totalorder %s166, %s167
      %p178 = scmp.eq.s32.totalorder %s25, 0
      %p179 = por %p177, %p178
      %p180 = scmp.ne.s32.totalorder %s166, %s167
      %p181 = scmp.eq.s32.totalorder %s26, 7
      %p182 = por %p180, %p181
      %p184 = scmp.ne.s32.totalorder %s167, %s183
      %p185 = scmp.eq.s32.totalorder %s26, 0
      %p186 = por %p184, %p185
      %p187 = scmp.le.s32.totalorder 1, %s20
      %p188 = scmp.lt.s32.totalorder %s20, 9
      %p189 = pnand %p187, %p188
      %p190 = pneg %p189
      // Predicated region
      $region9: #{tpu_custom_call.1} parent=5 // pred_check
        _
      $region10: #{tpu_custom_call.1} parent=5 // pred_check_branch
        %192 = sbr.rel (%p189) target = $region12
      $region11: #{tpu_custom_call.1} parent=5 // pred_region
        %s193 = ssub.s32 %s20, 1
        // Predicated region
        $region13: #{tpu_custom_call.1} parent=11 // pred_check
          %p194 = pneg %p109
        $region14: #{tpu_custom_call.1} parent=11 // pred_check_branch
          %196 = sbr.rel (%p194) target = $region16
        $region15: #{tpu_custom_call.1} parent=11 // pred_region
          _
        $region16: #{tpu_custom_call.1} parent=11 // pred_fallthru
          _
        // Predicated region
        $region17: #{tpu_custom_call.1} parent=11 // pred_check
          %p197 = pneg %p130
        $region18: #{tpu_custom_call.1} parent=11 // pred_check_branch
          %199 = sbr.rel (%p197) target = $region20
        $region19: #{tpu_custom_call.1} parent=11 // pred_region
          _
        $region20: #{tpu_custom_call.1} parent=11 // pred_fallthru
          _
        // Predicated region
        $region21: #{tpu_custom_call.1} parent=11 // pred_check
          %p200 = pneg %p151
        $region22: #{tpu_custom_call.1} parent=11 // pred_check_branch
          %202 = sbr.rel (%p200) target = $region24
        $region23: #{tpu_custom_call.1} parent=11 // pred_region
          _
        $region24: #{tpu_custom_call.1} parent=11 // pred_fallthru
          _
      $region12: #{tpu_custom_call.1} parent=5 // pred_fallthru
        _
      %p203 = scmp.lt.s32.totalorder %s20, 8
      // Predicated region
      $region25: #{tpu_custom_call.1} parent=5 // pred_check
        %p204 = pneg %p203
      $region26: #{tpu_custom_call.1} parent=5 // pred_check_branch
        %206 = sbr.rel (%p204) target = $region28
      $region27: #{tpu_custom_call.1} parent=5 // pred_region
        // Predicated region
        $region29: #{tpu_custom_call.1} parent=27 // pred_check
          %p207 = pneg %p54
        $region30: #{tpu_custom_call.1} parent=27 // pred_check_branch
          %209 = sbr.rel (%p207) target = $region32
        $region31: #{tpu_custom_call.1} parent=27 // pred_region
          %s210 = sand.u32 %s44, 1
          %s211 = scalar_lea.sflag [#allocation3], %s210
          %s212 = sand.u32 %s44, 1
          %s213 = smul.addr %s212, 32
          %s214 = scalar_lea.vmem [#allocation2], %s213
          %s215 = smul.u32 8, %s28
          %s217 = ssub.s32 512, 512
          %218 = vsyncadd %s211, %s217
          %s219 = smul.addr %s27, 32
          %s220 = sadd.s32 %s215, %s219
          %s221 = smul.addr %s220, 64
          %s222 = scalar_lea.hbm %s0, %s221
          %s224 = sshll.u32 %s214, 4
          %s225 = int_to_ptr.vmem [resolvable:$true] %s224
          %227 = dma.hbm_to_vmem [thread:$0]  %s222, 512, %s225, %s211
        $region32: #{tpu_custom_call.1} parent=27 // pred_fallthru
          _
        // Predicated region
        $region33: #{tpu_custom_call.1} parent=27 // pred_check
          %p228 = pneg %p82
        $region34: #{tpu_custom_call.1} parent=27 // pred_check_branch
          %230 = sbr.rel (%p228) target = $region36
        $region35: #{tpu_custom_call.1} parent=27 // pred_region
          %s231 = sand.u32 %s72, 1
          %s232 = scalar_lea.sflag [#allocation6], %s231
          %s233 = sand.u32 %s72, 1
          %s234 = smul.addr %s233, 32
          %s235 = scalar_lea.vmem [#allocation5], %s234
          %s236 = smul.u32 8, %s28
          %s238 = ssub.s32 512, 512
          %239 = vsyncadd %s232, %s238
          %s240 = smul.addr %s27, 32
          %s241 = sadd.s32 %s236, %s240
          %s242 = smul.addr %s241, 64
          %s243 = scalar_lea.hbm %s1, %s242
          %s245 = sshll.u32 %s235, 4
          %s246 = int_to_ptr.vmem [resolvable:$true] %s245
          %248 = dma.hbm_to_vmem [thread:$0]  %s243, 512, %s246, %s232
        $region36: #{tpu_custom_call.1} parent=27 // pred_fallthru
          _
      $region28: #{tpu_custom_call.1} parent=5 // pred_fallthru
        _
      %p249 = scmp.le.s32.totalorder 1, %s20
      %p250 = scmp.lt.s32.totalorder %s20, 9
      %p251 = pnand %p249, %p250
      %p252 = pneg %p251
      // Predicated region
      $region37: #{tpu_custom_call.1} parent=5 // pred_check
        _
      $region38: #{tpu_custom_call.1} parent=5 // pred_check_branch
        %254 = sbr.rel (%p251) target = $region40
      $region39: #{tpu_custom_call.1} parent=5 // pred_region
        %s255 = ssub.s32 %s20, 1
        %s256 = sand.u32 %s47, 1
        %s257 = scalar_lea.sflag [#allocation3], %s256
        %s258 = sand.u32 %s47, 1
        %s259 = smul.addr %s258, 32
        %s260 = scalar_lea.vmem [#allocation2], %s259
        // Predicated region
        $region41: #{tpu_custom_call.1} parent=39 // pred_check
          %p261 = pneg %p60
        $region42: #{tpu_custom_call.1} parent=39 // pred_check_branch
          %263 = sbr.rel (%p261) target = $region44
        $region43: #{tpu_custom_call.1} parent=39 // pred_region
          %264 = dma.done %s257, 512
        $region44: #{tpu_custom_call.1} parent=39 // pred_fallthru
          _
        %s265 = sand.u32 %s75, 1
        %s266 = scalar_lea.sflag [#allocation6], %s265
        %s267 = sand.u32 %s75, 1
        %s268 = smul.addr %s267, 32
        %s269 = scalar_lea.vmem [#allocation5], %s268
        // Predicated region
        $region45: #{tpu_custom_call.1} parent=39 // pred_check
          %p270 = pneg %p88
        $region46: #{tpu_custom_call.1} parent=39 // pred_check_branch
          %272 = sbr.rel (%p270) target = $region48
        $region47: #{tpu_custom_call.1} parent=39 // pred_region
          %273 = dma.done %s266, 512
        $region48: #{tpu_custom_call.1} parent=39 // pred_fallthru
          _
        %s274 = sand.u32 %s47, 1
        %s275 = scalar_lea.sflag [#allocation3], %s274
        %s276 = sand.u32 %s47, 1
        %s277 = smul.addr %s276, 32
        %s278 = scalar_lea.vmem [#allocation2], %s277
        %p279 = pneg %p60
        %p280 = pneg %p57
        %s281 = sand.u32 %s75, 1
        %s282 = scalar_lea.sflag [#allocation6], %s281
        %s283 = sand.u32 %s75, 1
        %s284 = smul.addr %s283, 32
        %s285 = scalar_lea.vmem [#allocation5], %s284
        %p286 = pneg %p88
        %p287 = pneg %p85
        %p288 = pneg %p109
        %p289 = pneg %p106
        %p290 = pneg %p130
        %p291 = pneg %p127
        %p292 = pneg %p151
        %p293 = pneg %p148
        %p294 = pneg %p179
        %p295 = pneg %p176
        %s296 = sand.u32 %s166, 1
        %s297 = scalar_lea.sflag [#allocation4], %s296
        %s298 = sand.u32 %s166, 1
        %s299 = smul.addr %s298, 64
        %s300 = scalar_lea.vmem [#allocation7], %s299
        %s301 = smul.u32 8, %s30
        %s302 = smul.u32 8, %s30
        %s303 = smul.u32 8, %s30
        %v304 = vld [vmem:[%s2] sm:$0xff]
        %v305 = vld [vmem:[%s260] sm:$0xff]
        %v306 = vld [vmem:[%s260 + $0x8] sm:$0xff]
        %v307 = vld [vmem:[%s260 + $0x10] sm:$0xff]
        %v308 = vld [vmem:[%s260 + $0x18] sm:$0xff]
        %v309 = vld [vmem:[%s3] sm:$0xff]
        %v310 = vld [vmem:[%s269] sm:$0xff]
        %v311 = vld [vmem:[%s269 + $0x8] sm:$0xff]
        %v312 = vld [vmem:[%s269 + $0x10] sm:$0xff]
        %v313 = vld [vmem:[%s269 + $0x18] sm:$0xff]
        %v318 = vcombine.high %v310, %v310
        %v319 = vcombine.high %v311, %v311
        %v320 = vcombine.high %v312, %v312
        %v321 = vcombine.high %v313, %v313
        %vm322 = vcmask 31744
        %v324 = vsel %vm322, %v309, 0
        %vm326 = vcmask 1043456
        %v327 = vsel %vm326, %v310, 0
        %v329 = vsel %vm326, %v318, 0
        %v331 = vsel %vm326, %v311, 0
        %v333 = vsel %vm326, %v319, 0
        %v335 = vsel %vm326, %v312, 0
        %v337 = vsel %vm326, %v320, 0
        %v339 = vsel %vm326, %v313, 0
        %v341 = vsel %vm326, %v321, 0
        %343 = vmatprep.subr.mxu0 %v329
        %344 = vmatpush1.msra.mxu0 %v327
        %345 = vmatprep.subr.mxu0 0.0
        %346 = vmatpush1.msra.mxu0 0.0
        %347 = vmatprep.subr.mxu0 0.0
        %348 = vmatpush1.msra.mxu0 0.0
        %349 = vmatprep.subr.mxu0 0.0
        %350 = vmatpush1.msra.mxu0 0.0
        %351 = vmatprep.subr.mxu0 0.0
        %352 = vmatpush1.msra.mxu0 0.0
        %353 = vmatprep.subr.mxu0 0.0
        %354 = vmatpush1.msra.mxu0 0.0
        %355 = vmatprep.subr.mxu0 0.0
        %356 = vmatpush1.msra.mxu0 0.0
        %357 = vmatprep.subr.mxu0 0.0
        %358 = vmatpush1.msra.mxu0 0.0
        %359 = vmatprep.subr.mxu0 0.0
        %360 = vmatpush1.msra.mxu0 0.0
        %361 = vmatprep.subr.mxu0 0.0
        %362 = vmatpush1.msra.mxu0 0.0
        %363 = vmatprep.subr.mxu0 0.0
        %364 = vmatpush1.msra.mxu0 0.0
        %365 = vmatprep.subr.mxu0 0.0
        %366 = vmatpush1.msra.mxu0 0.0
        %367 = vmatprep.subr.mxu0 0.0
        %368 = vmatpush1.msra.mxu0 0.0
        %369 = vmatprep.subr.mxu0 0.0
        %370 = vmatpush1.msra.mxu0 0.0
        %371 = vmatprep.subr.mxu0 0.0
        %372 = vmatpush1.msra.mxu0 0.0
        %373 = vmatprep.subr.mxu0 0.0
        %374 = vmatpush1.msra.mxu0 0.0
        %375 = vmatprep.subr.mxu0 0.0
        %376 = vmatpush1.msra.mxu0 0.0
        %377 = vmatprep.subr.mxu0 0.0
        %378 = vmatpush1.msra.mxu0 0.0
        %379 = vmatprep.subr.mxu0 0.0
        %380 = vmatpush1.msra.mxu0 0.0
        %381 = vmatprep.subr.mxu0 0.0
        %382 = vmatpush1.msra.mxu0 0.0
        %383 = vmatprep.subr.mxu0 0.0
        %384 = vmatpush1.msra.mxu0 0.0
        %385 = vmatprep.subr.mxu0 0.0
        %386 = vmatpush1.msra.mxu0 0.0
        %387 = vmatprep.subr.mxu0 0.0
        %388 = vmatpush1.msra.mxu0 0.0
        %389 = vmatprep.subr.mxu0 0.0
        %390 = vmatpush1.msra.mxu0 0.0
        %391 = vmatprep.subr.mxu0 0.0
        %392 = vmatpush1.msra.mxu0 0.0
        %393 = vmatprep.subr.mxu0 0.0
        %394 = vmatpush1.msra.mxu0 0.0
        %395 = vmatprep.subr.mxu0 0.0
        %396 = vmatpush1.msra.mxu0 0.0
        %397 = vmatprep.subr.mxu0 0.0
        %398 = vmatpush1.msra.mxu0 0.0
        %399 = vmatprep.subr.mxu0 0.0
        %400 = vmatpush1.msra.mxu0 0.0
        %401 = vmatprep.subr.mxu0 0.0
        %402 = vmatpush1.msra.mxu0 0.0
        %403 = vmatprep.subr.mxu0 0.0
        %404 = vmatpush1.msra.mxu0 0.0
        %405 = vmatprep.subr.mxu0 0.0
        %406 = vmatpush1.msra.mxu0 0.0
        %407 = vmatprep.mubr.f32.mxu0 0.0
        %408 = vmatmul.mubr.f32.gmra.mrb[0].mxu0 %v324
        %v409 = vpop.f32.mrb[0].mxu0
        %v410 = vadd.f32 0.0, %v409
        %v411 = vpop.f32.mrb[0].mxu0
        %v412 = vadd.f32 0.0, %v411
        %413 = vdwg.mxu0
        %414 = vmatprep.subr.mxu0 %v333
        %415 = vmatpush1.msra.mxu0 %v331
        %416 = vmatprep.subr.mxu0 0.0
        %417 = vmatpush1.msra.mxu0 0.0
        %418 = vmatprep.subr.mxu0 0.0
        %419 = vmatpush1.msra.mxu0 0.0
        %420 = vmatprep.subr.mxu0 0.0
        %421 = vmatpush1.msra.mxu0 0.0
        %422 = vmatprep.subr.mxu0 0.0
        %423 = vmatpush1.msra.mxu0 0.0
        %424 = vmatprep.subr.mxu0 0.0
        %425 = vmatpush1.msra.mxu0 0.0
        %426 = vmatprep.subr.mxu0 0.0
        %427 = vmatpush1.msra.mxu0 0.0
        %428 = vmatprep.subr.mxu0 0.0
        %429 = vmatpush1.msra.mxu0 0.0
        %430 = vmatprep.subr.mxu0 0.0
        %431 = vmatpush1.msra.mxu0 0.0
        %432 = vmatprep.subr.mxu0 0.0
        %433 = vmatpush1.msra.mxu0 0.0
        %434 = vmatprep.subr.mxu0 0.0
        %435 = vmatpush1.msra.mxu0 0.0
        %436 = vmatprep.subr.mxu0 0.0
        %437 = vmatpush1.msra.mxu0 0.0
        %438 = vmatprep.subr.mxu0 0.0
        %439 = vmatpush1.msra.mxu0 0.0
        %440 = vmatprep.subr.mxu0 0.0
        %441 = vmatpush1.msra.mxu0 0.0
        %442 = vmatprep.subr.mxu0 0.0
        %443 = vmatpush1.msra.mxu0 0.0
        %444 = vmatprep.subr.mxu0 0.0
        %445 = vmatpush1.msra.mxu0 0.0
        %446 = vmatprep.subr.mxu0 0.0
        %447 = vmatpush1.msra.mxu0 0.0
        %448 = vmatprep.subr.mxu0 0.0
        %449 = vmatpush1.msra.mxu0 0.0
        %450 = vmatprep.subr.mxu0 0.0
        %451 = vmatpush1.msra.mxu0 0.0
        %452 = vmatprep.subr.mxu0 0.0
        %453 = vmatpush1.msra.mxu0 0.0
        %454 = vmatprep.subr.mxu0 0.0
        %455 = vmatpush1.msra.mxu0 0.0
        %456 = vmatprep.subr.mxu0 0.0
        %457 = vmatpush1.msra.mxu0 0.0
        %458 = vmatprep.subr.mxu0 0.0
        %459 = vmatpush1.msra.mxu0 0.0
        %460 = vmatprep.subr.mxu0 0.0
        %461 = vmatpush1.msra.mxu0 0.0
        %462 = vmatprep.subr.mxu0 0.0
        %463 = vmatpush1.msra.mxu0 0.0
        %464 = vmatprep.subr.mxu0 0.0
        %465 = vmatpush1.msra.mxu0 0.0
        %466 = vmatprep.subr.mxu0 0.0
        %467 = vmatpush1.msra.mxu0 0.0
        %468 = vmatprep.subr.mxu0 0.0
        %469 = vmatpush1.msra.mxu0 0.0
        %470 = vmatprep.subr.mxu0 0.0
        %471 = vmatpush1.msra.mxu0 0.0
        %472 = vmatprep.subr.mxu0 0.0
        %473 = vmatpush1.msra.mxu0 0.0
        %474 = vmatprep.subr.mxu0 0.0
        %475 = vmatpush1.msra.mxu0 0.0
        %476 = vmatprep.subr.mxu0 0.0
        %477 = vmatpush1.msra.mxu0 0.0
        %478 = vmatprep.mubr.f32.mxu0 0.0
        %479 = vmatmul.mubr.f32.gmra.mrb[0].mxu0 %v324
        %v480 = vpop.f32.mrb[0].mxu0
        %v481 = vadd.f32 0.0, %v480
        %v482 = vpop.f32.mrb[0].mxu0
        %v483 = vadd.f32 0.0, %v482
        %484 = vdwg.mxu0
        %485 = vmatprep.subr.mxu0 %v337
        %486 = vmatpush1.msra.mxu0 %v335
        %487 = vmatprep.subr.mxu0 0.0
        %488 = vmatpush1.msra.mxu0 0.0
        %489 = vmatprep.subr.mxu0 0.0
        %490 = vmatpush1.msra.mxu0 0.0
        %491 = vmatprep.subr.mxu0 0.0
        %492 = vmatpush1.msra.mxu0 0.0
        %493 = vmatprep.subr.mxu0 0.0
        %494 = vmatpush1.msra.mxu0 0.0
        %495 = vmatprep.subr.mxu0 0.0
        %496 = vmatpush1.msra.mxu0 0.0
        %497 = vmatprep.subr.mxu0 0.0
        %498 = vmatpush1.msra.mxu0 0.0
        %499 = vmatprep.subr.mxu0 0.0
        %500 = vmatpush1.msra.mxu0 0.0
        %501 = vmatprep.subr.mxu0 0.0
        %502 = vmatpush1.msra.mxu0 0.0
        %503 = vmatprep.subr.mxu0 0.0
        %504 = vmatpush1.msra.mxu0 0.0
        %505 = vmatprep.subr.mxu0 0.0
        %506 = vmatpush1.msra.mxu0 0.0
        %507 = vmatprep.subr.mxu0 0.0
        %508 = vmatpush1.msra.mxu0 0.0
        %509 = vmatprep.subr.mxu0 0.0
        %510 = vmatpush1.msra.mxu0 0.0
        %511 = vmatprep.subr.mxu0 0.0
        %512 = vmatpush1.msra.mxu0 0.0
        %513 = vmatprep.subr.mxu0 0.0
        %514 = vmatpush1.msra.mxu0 0.0
        %515 = vmatprep.subr.mxu0 0.0
        %516 = vmatpush1.msra.mxu0 0.0
        %517 = vmatprep.subr.mxu0 0.0
        %518 = vmatpush1.msra.mxu0 0.0
        %519 = vmatprep.subr.mxu0 0.0
        %520 = vmatpush1.msra.mxu0 0.0
        %521 = vmatprep.subr.mxu0 0.0
        %522 = vmatpush1.msra.mxu0 0.0
        %523 = vmatprep.subr.mxu0 0.0
        %524 = vmatpush1.msra.mxu0 0.0
        %525 = vmatprep.subr.mxu0 0.0
        %526 = vmatpush1.msra.mxu0 0.0
        %527 = vmatprep.subr.mxu0 0.0
        %528 = vmatpush1.msra.mxu0 0.0
        %529 = vmatprep.subr.mxu0 0.0
        %530 = vmatpush1.msra.mxu0 0.0
        %531 = vmatprep.subr.mxu0 0.0
        %532 = vmatpush1.msra.mxu0 0.0
        %533 = vmatprep.subr.mxu0 0.0
        %534 = vmatpush1.msra.mxu0 0.0
        %535 = vmatprep.subr.mxu0 0.0
        %536 = vmatpush1.msra.mxu0 0.0
        %537 = vmatprep.subr.mxu0 0.0
        %538 = vmatpush1.msra.mxu0 0.0
        %539 = vmatprep.subr.mxu0 0.0
        %540 = vmatpush1.msra.mxu0 0.0
        %541 = vmatprep.subr.mxu0 0.0
        %542 = vmatpush1.msra.mxu0 0.0
        %543 = vmatprep.subr.mxu0 0.0
        %544 = vmatpush1.msra.mxu0 0.0
        %545 = vmatprep.subr.mxu0 0.0
        %546 = vmatpush1.msra.mxu0 0.0
        %547 = vmatprep.subr.mxu0 0.0
        %548 = vmatpush1.msra.mxu0 0.0
        %549 = vmatprep.mubr.f32.mxu0 0.0
        %550 = vmatmul.mubr.f32.gmra.mrb[0].mxu0 %v324
        %v551 = vpop.f32.mrb[0].mxu0
        %v552 = vadd.f32 0.0, %v551
        %v553 = vpop.f32.mrb[0].mxu0
        %v554 = vadd.f32 0.0, %v553
        %555 = vdwg.mxu0
        %556 = vmatprep.subr.mxu0 %v341
        %557 = vmatpush1.msra.mxu0 %v339
        %558 = vmatprep.subr.mxu0 0.0
        %559 = vmatpush1.msra.mxu0 0.0
        %560 = vmatprep.subr.mxu0 0.0
        %561 = vmatpush1.msra.mxu0 0.0
        %562 = vmatprep.subr.mxu0 0.0
        %563 = vmatpush1.msra.mxu0 0.0
        %564 = vmatprep.subr.mxu0 0.0
        %565 = vmatpush1.msra.mxu0 0.0
        %566 = vmatprep.subr.mxu0 0.0
        %567 = vmatpush1.msra.mxu0 0.0
        %568 = vmatprep.subr.mxu0 0.0
        %569 = vmatpush1.msra.mxu0 0.0
        %570 = vmatprep.subr.mxu0 0.0
        %571 = vmatpush1.msra.mxu0 0.0
        %572 = vmatprep.subr.mxu0 0.0
        %573 = vmatpush1.msra.mxu0 0.0
        %574 = vmatprep.subr.mxu0 0.0
        %575 = vmatpush1.msra.mxu0 0.0
        %576 = vmatprep.subr.mxu0 0.0
        %577 = vmatpush1.msra.mxu0 0.0
        %578 = vmatprep.subr.mxu0 0.0
        %579 = vmatpush1.msra.mxu0 0.0
        %580 = vmatprep.subr.mxu0 0.0
        %581 = vmatpush1.msra.mxu0 0.0
        %582 = vmatprep.subr.mxu0 0.0
        %583 = vmatpush1.msra.mxu0 0.0
        %584 = vmatprep.subr.mxu0 0.0
        %585 = vmatpush1.msra.mxu0 0.0
        %586 = vmatprep.subr.mxu0 0.0
        %587 = vmatpush1.msra.mxu0 0.0
        %588 = vmatprep.subr.mxu0 0.0
        %589 = vmatpush1.msra.mxu0 0.0
        %590 = vmatprep.subr.mxu0 0.0
        %591 = vmatpush1.msra.mxu0 0.0
        %592 = vmatprep.subr.mxu0 0.0
        %593 = vmatpush1.msra.mxu0 0.0
        %594 = vmatprep.subr.mxu0 0.0
        %595 = vmatpush1.msra.mxu0 0.0
        %596 = vmatprep.subr.mxu0 0.0
        %597 = vmatpush1.msra.mxu0 0.0
        %598 = vmatprep.subr.mxu0 0.0
        %599 = vmatpush1.msra.mxu0 0.0
        %600 = vmatprep.subr.mxu0 0.0
        %601 = vmatpush1.msra.mxu0 0.0
        %602 = vmatprep.subr.mxu0 0.0
        %603 = vmatpush1.msra.mxu0 0.0
        %604 = vmatprep.subr.mxu0 0.0
        %605 = vmatpush1.msra.mxu0 0.0
        %606 = vmatprep.subr.mxu0 0.0
        %607 = vmatpush1.msra.mxu0 0.0
        %608 = vmatprep.subr.mxu0 0.0
        %609 = vmatpush1.msra.mxu0 0.0
        %610 = vmatprep.subr.mxu0 0.0
        %611 = vmatpush1.msra.mxu0 0.0
        %612 = vmatprep.subr.mxu0 0.0
        %613 = vmatpush1.msra.mxu0 0.0
        %614 = vmatprep.subr.mxu0 0.0
        %615 = vmatpush1.msra.mxu0 0.0
        %616 = vmatprep.subr.mxu0 0.0
        %617 = vmatpush1.msra.mxu0 0.0
        %618 = vmatprep.subr.mxu0 0.0
        %619 = vmatpush1.msra.mxu0 0.0
        %620 = vmatprep.mubr.f32.mxu0 0.0
        %621 = vmatmul.mubr.f32.gmra.mrb[0].mxu0 %v324
        %v622 = vpop.f32.mrb[0].mxu0
        %v623 = vadd.f32 0.0, %v622
        %v624 = vpop.f32.mrb[0].mxu0
        %v625 = vadd.f32 0.0, %v624
        %626 = vdwg.mxu0
        %v631 = vcombine.high %v305, %v305
        %v632 = vcombine.high %v306, %v306
        %v633 = vcombine.high %v307, %v307
        %v634 = vcombine.high %v308, %v308
        %v636 = vsel %vm322, %v304, 0
        %v638 = vsel %vm326, %v305, 0
        %v640 = vsel %vm326, %v631, 0
        %v642 = vsel %vm326, %v306, 0
        %v644 = vsel %vm326, %v632, 0
        %v646 = vsel %vm326, %v307, 0
        %v648 = vsel %vm326, %v633, 0
        %v650 = vsel %vm326, %v308, 0
        %v652 = vsel %vm326, %v634, 0
        %654 = vmatprep.subr.mxu0 %v640
        %655 = vmatpush1.msra.mxu0 %v638
        %656 = vmatprep.subr.mxu0 0.0
        %657 = vmatpush1.msra.mxu0 0.0
        %658 = vmatprep.subr.mxu0 0.0
        %659 = vmatpush1.msra.mxu0 0.0
        %660 = vmatprep.subr.mxu0 0.0
        %661 = vmatpush1.msra.mxu0 0.0
        %662 = vmatprep.subr.mxu0 0.0
        %663 = vmatpush1.msra.mxu0 0.0
        %664 = vmatprep.subr.mxu0 0.0
        %665 = vmatpush1.msra.mxu0 0.0
        %666 = vmatprep.subr.mxu0 0.0
        %667 = vmatpush1.msra.mxu0 0.0
        %668 = vmatprep.subr.mxu0 0.0
        %669 = vmatpush1.msra.mxu0 0.0
        %670 = vmatprep.subr.mxu0 0.0
        %671 = vmatpush1.msra.mxu0 0.0
        %672 = vmatprep.subr.mxu0 0.0
        %673 = vmatpush1.msra.mxu0 0.0
        %674 = vmatprep.subr.mxu0 0.0
        %675 = vmatpush1.msra.mxu0 0.0
        %676 = vmatprep.subr.mxu0 0.0
        %677 = vmatpush1.msra.mxu0 0.0
        %678 = vmatprep.subr.mxu0 0.0
        %679 = vmatpush1.msra.mxu0 0.0
        %680 = vmatprep.subr.mxu0 0.0
        %681 = vmatpush1.msra.mxu0 0.0
        %682 = vmatprep.subr.mxu0 0.0
        %683 = vmatpush1.msra.mxu0 0.0
        %684 = vmatprep.subr.mxu0 0.0
        %685 = vmatpush1.msra.mxu0 0.0
        %686 = vmatprep.subr.mxu0 0.0
        %687 = vmatpush1.msra.mxu0 0.0
        %688 = vmatprep.subr.mxu0 0.0
        %689 = vmatpush1.msra.mxu0 0.0
        %690 = vmatprep.subr.mxu0 0.0
        %691 = vmatpush1.msra.mxu0 0.0
        %692 = vmatprep.subr.mxu0 0.0
        %693 = vmatpush1.msra.mxu0 0.0
        %694 = vmatprep.subr.mxu0 0.0
        %695 = vmatpush1.msra.mxu0 0.0
        %696 = vmatprep.subr.mxu0 0.0
        %697 = vmatpush1.msra.mxu0 0.0
        %698 = vmatprep.subr.mxu0 0.0
        %699 = vmatpush1.msra.mxu0 0.0
        %700 = vmatprep.subr.mxu0 0.0
        %701 = vmatpush1.msra.mxu0 0.0
        %702 = vmatprep.subr.mxu0 0.0
        %703 = vmatpush1.msra.mxu0 0.0
        %704 = vmatprep.subr.mxu0 0.0
        %705 = vmatpush1.msra.mxu0 0.0
        %706 = vmatprep.subr.mxu0 0.0
        %707 = vmatpush1.msra.mxu0 0.0
        %708 = vmatprep.subr.mxu0 0.0
        %709 = vmatpush1.msra.mxu0 0.0
        %710 = vmatprep.subr.mxu0 0.0
        %711 = vmatpush1.msra.mxu0 0.0
        %712 = vmatprep.subr.mxu0 0.0
        %713 = vmatpush1.msra.mxu0 0.0
        %714 = vmatprep.subr.mxu0 0.0
        %715 = vmatpush1.msra.mxu0 0.0
        %716 = vmatprep.subr.mxu0 0.0
        %717 = vmatpush1.msra.mxu0 0.0
        %718 = vmatprep.mubr.f32.mxu0 0.0
        %719 = vmatmul.mubr.f32.gmra.mrb[0].mxu0 %v636
        %v720 = vpop.f32.mrb[0].mxu0
        %v721 = vadd.f32 %v410, %v720
        %v722 = vpop.f32.mrb[0].mxu0
        %v723 = vadd.f32 %v412, %v722
        %724 = vdwg.mxu0
        %725 = vmatprep.subr.mxu0 %v644
        %726 = vmatpush1.msra.mxu0 %v642
        %727 = vmatprep.subr.mxu0 0.0
        %728 = vmatpush1.msra.mxu0 0.0
        %729 = vmatprep.subr.mxu0 0.0
        %730 = vmatpush1.msra.mxu0 0.0
        %731 = vmatprep.subr.mxu0 0.0
        %732 = vmatpush1.msra.mxu0 0.0
        %733 = vmatprep.subr.mxu0 0.0
        %734 = vmatpush1.msra.mxu0 0.0
        %735 = vmatprep.subr.mxu0 0.0
        %736 = vmatpush1.msra.mxu0 0.0
        %737 = vmatprep.subr.mxu0 0.0
        %738 = vmatpush1.msra.mxu0 0.0
        %739 = vmatprep.subr.mxu0 0.0
        %740 = vmatpush1.msra.mxu0 0.0
        %741 = vmatprep.subr.mxu0 0.0
        %742 = vmatpush1.msra.mxu0 0.0
        %743 = vmatprep.subr.mxu0 0.0
        %744 = vmatpush1.msra.mxu0 0.0
        %745 = vmatprep.subr.mxu0 0.0
        %746 = vmatpush1.msra.mxu0 0.0
        %747 = vmatprep.subr.mxu0 0.0
        %748 = vmatpush1.msra.mxu0 0.0
        %749 = vmatprep.subr.mxu0 0.0
        %750 = vmatpush1.msra.mxu0 0.0
        %751 = vmatprep.subr.mxu0 0.0
        %752 = vmatpush1.msra.mxu0 0.0
        %753 = vmatprep.subr.mxu0 0.0
        %754 = vmatpush1.msra.mxu0 0.0
        %755 = vmatprep.subr.mxu0 0.0
        %756 = vmatpush1.msra.mxu0 0.0
        %757 = vmatprep.subr.mxu0 0.0
        %758 = vmatpush1.msra.mxu0 0.0
        %759 = vmatprep.subr.mxu0 0.0
        %760 = vmatpush1.msra.mxu0 0.0
        %761 = vmatprep.subr.mxu0 0.0
        %762 = vmatpush1.msra.mxu0 0.0
        %763 = vmatprep.subr.mxu0 0.0
        %764 = vmatpush1.msra.mxu0 0.0
        %765 = vmatprep.subr.mxu0 0.0
        %766 = vmatpush1.msra.mxu0 0.0
        %767 = vmatprep.subr.mxu0 0.0
        %768 = vmatpush1.msra.mxu0 0.0
        %769 = vmatprep.subr.mxu0 0.0
        %770 = vmatpush1.msra.mxu0 0.0
        %771 = vmatprep.subr.mxu0 0.0
        %772 = vmatpush1.msra.mxu0 0.0
        %773 = vmatprep.subr.mxu0 0.0
        %774 = vmatpush1.msra.mxu0 0.0
        %775 = vmatprep.subr.mxu0 0.0
        %776 = vmatpush1.msra.mxu0 0.0
        %777 = vmatprep.subr.mxu0 0.0
        %778 = vmatpush1.msra.mxu0 0.0
        %779 = vmatprep.subr.mxu0 0.0
        %780 = vmatpush1.msra.mxu0 0.0
        %781 = vmatprep.subr.mxu0 0.0
        %782 = vmatpush1.msra.mxu0 0.0
        %783 = vmatprep.subr.mxu0 0.0
        %784 = vmatpush1.msra.mxu0 0.0
        %785 = vmatprep.subr.mxu0 0.0
        %786 = vmatpush1.msra.mxu0 0.0
        %787 = vmatprep.subr.mxu0 0.0
        %788 = vmatpush1.msra.mxu0 0.0
        %789 = vmatprep.mubr.f32.mxu0 0.0
        %790 = vmatmul.mubr.f32.gmra.mrb[0].mxu0 %v636
        %v791 = vpop.f32.mrb[0].mxu0
        %v792 = vadd.f32 %v481, %v791
        %v793 = vpop.f32.mrb[0].mxu0
        %v794 = vadd.f32 %v483, %v793
        %795 = vdwg.mxu0
        %796 = vmatprep.subr.mxu0 %v648
        %797 = vmatpush1.msra.mxu0 %v646
        %798 = vmatprep.subr.mxu0 0.0
        %799 = vmatpush1.msra.mxu0 0.0
        %800 = vmatprep.subr.mxu0 0.0
        %801 = vmatpush1.msra.mxu0 0.0
        %802 = vmatprep.subr.mxu0 0.0
        %803 = vmatpush1.msra.mxu0 0.0
        %804 = vmatprep.subr.mxu0 0.0
        %805 = vmatpush1.msra.mxu0 0.0
        %806 = vmatprep.subr.mxu0 0.0
        %807 = vmatpush1.msra.mxu0 0.0
        %808 = vmatprep.subr.mxu0 0.0
        %809 = vmatpush1.msra.mxu0 0.0
        %810 = vmatprep.subr.mxu0 0.0
        %811 = vmatpush1.msra.mxu0 0.0
        %812 = vmatprep.subr.mxu0 0.0
        %813 = vmatpush1.msra.mxu0 0.0
        %814 = vmatprep.subr.mxu0 0.0
        %815 = vmatpush1.msra.mxu0 0.0
        %816 = vmatprep.subr.mxu0 0.0
        %817 = vmatpush1.msra.mxu0 0.0
        %818 = vmatprep.subr.mxu0 0.0
        %819 = vmatpush1.msra.mxu0 0.0
        %820 = vmatprep.subr.mxu0 0.0
        %821 = vmatpush1.msra.mxu0 0.0
        %822 = vmatprep.subr.mxu0 0.0
        %823 = vmatpush1.msra.mxu0 0.0
        %824 = vmatprep.subr.mxu0 0.0
        %825 = vmatpush1.msra.mxu0 0.0
        %826 = vmatprep.subr.mxu0 0.0
        %827 = vmatpush1.msra.mxu0 0.0
        %828 = vmatprep.subr.mxu0 0.0
        %829 = vmatpush1.msra.mxu0 0.0
        %830 = vmatprep.subr.mxu0 0.0
        %831 = vmatpush1.msra.mxu0 0.0
        %832 = vmatprep.subr.mxu0 0.0
        %833 = vmatpush1.msra.mxu0 0.0
        %834 = vmatprep.subr.mxu0 0.0
        %835 = vmatpush1.msra.mxu0 0.0
        %836 = vmatprep.subr.mxu0 0.0
        %837 = vmatpush1.msra.mxu0 0.0
        %838 = vmatprep.subr.mxu0 0.0
        %839 = vmatpush1.msra.mxu0 0.0
        %840 = vmatprep.subr.mxu0 0.0
        %841 = vmatpush1.msra.mxu0 0.0
        %842 = vmatprep.subr.mxu0 0.0
        %843 = vmatpush1.msra.mxu0 0.0
        %844 = vmatprep.subr.mxu0 0.0
        %845 = vmatpush1.msra.mxu0 0.0
        %846 = vmatprep.subr.mxu0 0.0
        %847 = vmatpush1.msra.mxu0 0.0
        %848 = vmatprep.subr.mxu0 0.0
        %849 = vmatpush1.msra.mxu0 0.0
        %850 = vmatprep.subr.mxu0 0.0
        %851 = vmatpush1.msra.mxu0 0.0
        %852 = vmatprep.subr.mxu0 0.0
        %853 = vmatpush1.msra.mxu0 0.0
        %854 = vmatprep.subr.mxu0 0.0
        %855 = vmatpush1.msra.mxu0 0.0
        %856 = vmatprep.subr.mxu0 0.0
        %857 = vmatpush1.msra.mxu0 0.0
        %858 = vmatprep.subr.mxu0 0.0
        %859 = vmatpush1.msra.mxu0 0.0
        %860 = vmatprep.mubr.f32.mxu0 0.0
        %861 = vmatmul.mubr.f32.gmra.mrb[0].mxu0 %v636
        %v862 = vpop.f32.mrb[0].mxu0
        %v863 = vadd.f32 %v552, %v862
        %v864 = vpop.f32.mrb[0].mxu0
        %v865 = vadd.f32 %v554, %v864
        %866 = vdwg.mxu0
        %867 = vmatprep.subr.mxu0 %v652
        %868 = vmatpush1.msra.mxu0 %v650
        %869 = vmatprep.subr.mxu0 0.0
        %870 = vmatpush1.msra.mxu0 0.0
        %871 = vmatprep.subr.mxu0 0.0
        %872 = vmatpush1.msra.mxu0 0.0
        %873 = vmatprep.subr.mxu0 0.0
        %874 = vmatpush1.msra.mxu0 0.0
        %875 = vmatprep.subr.mxu0 0.0
        %876 = vmatpush1.msra.mxu0 0.0
        %877 = vmatprep.subr.mxu0 0.0
        %878 = vmatpush1.msra.mxu0 0.0
        %879 = vmatprep.subr.mxu0 0.0
        %880 = vmatpush1.msra.mxu0 0.0
        %881 = vmatprep.subr.mxu0 0.0
        %882 = vmatpush1.msra.mxu0 0.0
        %883 = vmatprep.subr.mxu0 0.0
        %884 = vmatpush1.msra.mxu0 0.0
        %885 = vmatprep.subr.mxu0 0.0
        %886 = vmatpush1.msra.mxu0 0.0
        %887 = vmatprep.subr.mxu0 0.0
        %888 = vmatpush1.msra.mxu0 0.0
        %889 = vmatprep.subr.mxu0 0.0
        %890 = vmatpush1.msra.mxu0 0.0
        %891 = vmatprep.subr.mxu0 0.0
        %892 = vmatpush1.msra.mxu0 0.0
        %893 = vmatprep.subr.mxu0 0.0
        %894 = vmatpush1.msra.mxu0 0.0
        %895 = vmatprep.subr.mxu0 0.0
        %896 = vmatpush1.msra.mxu0 0.0
        %897 = vmatprep.subr.mxu0 0.0
        %898 = vmatpush1.msra.mxu0 0.0
        %899 = vmatprep.subr.mxu0 0.0
        %900 = vmatpush1.msra.mxu0 0.0
        %901 = vmatprep.subr.mxu0 0.0
        %902 = vmatpush1.msra.mxu0 0.0
        %903 = vmatprep.subr.mxu0 0.0
        %904 = vmatpush1.msra.mxu0 0.0
        %905 = vmatprep.subr.mxu0 0.0
        %906 = vmatpush1.msra.mxu0 0.0
        %907 = vmatprep.subr.mxu0 0.0
        %908 = vmatpush1.msra.mxu0 0.0
        %909 = vmatprep.subr.mxu0 0.0
        %910 = vmatpush1.msra.mxu0 0.0
        %911 = vmatprep.subr.mxu0 0.0
        %912 = vmatpush1.msra.mxu0 0.0
        %913 = vmatprep.subr.mxu0 0.0
        %914 = vmatpush1.msra.mxu0 0.0
        %915 = vmatprep.subr.mxu0 0.0
        %916 = vmatpush1.msra.mxu0 0.0
        %917 = vmatprep.subr.mxu0 0.0
        %918 = vmatpush1.msra.mxu0 0.0
        %919 = vmatprep.subr.mxu0 0.0
        %920 = vmatpush1.msra.mxu0 0.0
        %921 = vmatprep.subr.mxu0 0.0
        %922 = vmatpush1.msra.mxu0 0.0
        %923 = vmatprep.subr.mxu0 0.0
        %924 = vmatpush1.msra.mxu0 0.0
        %925 = vmatprep.subr.mxu0 0.0
        %926 = vmatpush1.msra.mxu0 0.0
        %927 = vmatprep.subr.mxu0 0.0
        %928 = vmatpush1.msra.mxu0 0.0
        %929 = vmatprep.subr.mxu0 0.0
        %930 = vmatpush1.msra.mxu0 0.0
        %931 = vmatprep.mubr.f32.mxu0 0.0
        %932 = vmatmul.mubr.f32.gmra.mrb[0].mxu0 %v636
        %v933 = vpop.f32.mrb[0].mxu0
        %v934 = vadd.f32 %v623, %v933
        %v935 = vpop.f32.mrb[0].mxu0
        %v936 = vadd.f32 %v625, %v935
        %937 = vdwg.mxu0
        %v938 = vld [vmem:[%s4] sm:$0xff]
        %940 = vset.pattern.permute.xlu0 0
        %941 = vperm.xlu0 %940, %v938
        %v942 = vpop.permute.xlu0 %941
        %v944 = vadd.f32 %v721, %v942
        %v945 = vadd.f32 %v723, %v942
        %v946 = vadd.f32 %v792, %v942
        %v947 = vadd.f32 %v794, %v942
        %v948 = vadd.f32 %v863, %v942
        %v949 = vadd.f32 %v865, %v942
        %v950 = vadd.f32 %v934, %v942
        %v951 = vadd.f32 %v936, %v942
        %952 = vst [vmem:[%s300] sm:$0xff] %v944
        %953 = vst [vmem:[%s300 + $0x8] sm:$0xff] %v945
        %954 = vst [vmem:[%s300 + $0x10] sm:$0xff] %v946
        %955 = vst [vmem:[%s300 + $0x18] sm:$0xff] %v947
        %956 = vst [vmem:[%s300 + $0x20] sm:$0xff] %v948
        %957 = vst [vmem:[%s300 + $0x28] sm:$0xff] %v949
        %958 = vst [vmem:[%s300 + $0x30] sm:$0xff] %v950
        %959 = vst [vmem:[%s300 + $0x38] sm:$0xff] %v951
        %s960 = sand.u32 %s166, 1
        %s961 = scalar_lea.sflag [#allocation4], %s960
        %s962 = sand.u32 %s166, 1
        %s963 = smul.addr %s962, 64
        %s964 = scalar_lea.vmem [#allocation7], %s963
        // Predicated region
        $region49: #{tpu_custom_call.1} parent=39 // pred_check
          %p965 = pneg %p176
        $region50: #{tpu_custom_call.1} parent=39 // pred_check_branch
          %967 = sbr.rel (%p965) target = $region52
        $region51: #{tpu_custom_call.1} parent=39 // pred_region
          %s968 = smul.u32 8, %s30
          %s970 = ssub.s32 1024, 1024
          %971 = vsyncadd %s961, %s970
          %s972 = smul.addr %s29, 32
          %s973 = sadd.s32 %s968, %s972
          %s974 = smul.addr %s973, 128
          %s975 = scalar_lea.hbm %s5, %s974
          %s977 = sshll.u32 %s964, 4
          %s978 = int_to_ptr.vmem [resolvable:$true] %s977
          %980 = dma.vmem_to_hbm [thread:$0]  %s978, 1024, %s975, %s961
        $region52: #{tpu_custom_call.1} parent=39 // pred_fallthru
          _
      $region40: #{tpu_custom_call.1} parent=5 // pred_fallthru
        _
      %p981 = scmp.le.s32.totalorder 2, %s20
      // Predicated region
      $region53: #{tpu_custom_call.1} parent=5 // pred_check
        %p982 = pneg %p981
      $region54: #{tpu_custom_call.1} parent=5 // pred_check_branch
        %984 = sbr.rel (%p982) target = $region56
      $region55: #{tpu_custom_call.1} parent=5 // pred_region
        %s985 = ssub.s32 %s20, 2
        // Predicated region
        $region57: #{tpu_custom_call.1} parent=55 // pred_check
          %p986 = pneg %p182
        $region58: #{tpu_custom_call.1} parent=55 // pred_check_branch
          %988 = sbr.rel (%p986) target = $region60
        $region59: #{tpu_custom_call.1} parent=55 // pred_region
          %s989 = sand.u32 %s167, 1
          %s990 = scalar_lea.sflag [#allocation4], %s989
          %s991 = sand.u32 %s167, 1
          %s992 = smul.addr %s991, 64
          %s993 = scalar_lea.vmem [#allocation7], %s992
          %994 = dma.done %s990, 1024
        $region60: #{tpu_custom_call.1} parent=55 // pred_fallthru
          _
      $region56: #{tpu_custom_call.1} parent=5 // pred_fallthru
        _
    $region6: #{tpu_custom_call.1} parent=1 // loop_footer
      %s24 = sadd.s32 1, %s20
    $region7: #{tpu_custom_call.1} parent=1 // loop_footer_branch
      %19 = sbr.rel target = $region3
    $region8: #{tpu_custom_call.1} parent=1 // loop_exit
      _
    %995 = vsyncpa [#allocation3], 1
    %s996 = scalar_lea.sflag [#allocation3], 1
    %997 = vsyncpa %s996, 1
    %998 = vsyncpa [#allocation6], 1
    %s999 = scalar_lea.sflag [#allocation6], 1
    %1000 = vsyncpa %s999, 1
    %1001 = vsyncpa [#allocation4], 1
    %s1002 = scalar_lea.sflag [#allocation4], 1
    %1003 = vsyncpa %s1002, 1

</llo_original>
